<compile_context>
chip_gen: v7x
topology: tpu7x:2x2x1
jax: 0.10.0
libtpu: 0.0.40
codegen_flags: <defaults>
</compile_context>

<pallas_src>
import functools

import jax
import jax.numpy as jnp
from jax.experimental import pallas as pl
from jax.experimental.pallas import tpu as pltpu


def _round_up(x, m):
    return (x + m - 1) // m * m


def _cdiv(a, b):
    return -(-a // b)


def _device_tuning():
    """(block_budget_bytes, vmem_limit_bytes, prefer_many_blocks) per TPU generation."""
    kind = ""
    try:
        kind = jax.devices()[0].device_kind.lower()
    except Exception:
        pass
    if ("v5" in kind) or ("v6" in kind):
        # 128 MiB physical VMEM: big streaming blocks, explicit high scoped limit
        # (mandatory on v5e whose default scoped VMEM is only 16 MiB).
        return 8 * 1024 * 1024, 64 * 1024 * 1024, False
    # v7x (64 MiB physical VMEM) or unknown: stay conservative and keep several
    # row blocks alive so the "parallel" grid axis shards across both TensorCores.
    return 4 * 1024 * 1024, 40 * 1024 * 1024, True


def _ls_ce_partial_kernel(logits_ref, target_ref, out_ref, *, n_rows, tile_n, out_lanes):
    """Per row-block partial sums: lane0 = sum_rows sum_c log_softmax, lane1 = sum_rows log_softmax[tgt]."""
    pid = pl.program_id(0)
    x = logits_ref[...].astype(jnp.float32)                      # (TILE_N, C)
    tn, c = x.shape

    # Ragged tail: rows >= n_rows contain unspecified data; select them away.
    row_ids = pid * tile_n + jax.lax.broadcasted_iota(jnp.int32, (tn, 1), 0)
    valid = row_ids < n_rows                                     # (TILE_N, 1) bool

    # Work only with the max-shifted logits; the raw upcast dies here.
    m = jnp.max(x, axis=-1, keepdims=True)                       # (TILE_N, 1)
    xm = x - m                                                   # (TILE_N, C)
    lse = jnp.log(jnp.sum(jnp.exp(xm), axis=-1, keepdims=True))  # (TILE_N, 1)

    # sum_c log_softmax = sum_c(xm) - C * lse
    row_logp_sum = jnp.sum(xm, axis=-1, keepdims=True) - c * lse  # (TILE_N, 1)

    # log_softmax[n, tgt[n]] = xm[n, tgt[n]] - lse[n]
    tgt = target_ref[...]                                        # (TILE_N, 1) int32
    col = jax.lax.broadcasted_iota(jnp.int32, (1, c), 1)         # (1, C), broadcast in compare
    picked_xm = jnp.sum(jnp.where(col == tgt, xm, 0.0), axis=-1, keepdims=True)
    picked_logp = picked_xm - lse                                # (TILE_N, 1)

    blk_logp = jnp.sum(jnp.where(valid, row_logp_sum, 0.0))      # scalar
    blk_pick = jnp.sum(jnp.where(valid, picked_logp, 0.0))       # scalar

    # One lane-dense store: lane 0 <- logp partial, lane 1 <- picked partial.
    lane = jax.lax.broadcasted_iota(jnp.int32, (1, 1, out_lanes), 2)
    out_ref[...] = (jnp.where(lane == 0, blk_logp, 0.0)
                    + jnp.where(lane == 1, blk_pick, 0.0))


def label_smoothing_cross_entropy(output, target, eps=0.1, reduction='mean'):
    """JAX wrapper matching LabelSmoothingCrossEntropy.forward semantics."""
    if reduction not in ('mean', 'sum'):
        # TODO(synk): reduction='none' (per-sample vector output) not implemented.
        raise NotImplementedError("only 'mean' and 'sum' reductions supported")

    n, c = output.shape
    itemsize = jnp.dtype(output.dtype).itemsize
    budget_bytes, vmem_limit, prefer_split = _device_tuning()

    # Row tile: as many rows as the block budget allows (multiple of 8).
    rows_by_budget = max(8, (budget_bytes // max(1, c * itemsize)) // 8 * 8)
    tile_n = int(min(rows_by_budget, _round_up(n, 8)))
    if prefer_split:
        # Keep >= ~4 row blocks so both v7x TensorCores pull work on the
        # "parallel" grid axis (no-op for tiny N).
        tile_n = int(min(tile_n, max(8, _round_up(_cdiv(n, 4), 8))))
    num_blocks = _cdiv(n, tile_n)
    # TODO(synk): for LLM-scale C, also tile the class axis with an online
    # logsumexp accumulator instead of keeping full C per block.

    target_2d = target.reshape(n, 1).astype(jnp.int32)

    OUT_LANES = 128
    kernel = functools.partial(_ls_ce_partial_kernel,
                               n_rows=n, tile_n=tile_n, out_lanes=OUT_LANES)

    cost = pl.CostEstimate(
        flops=5 * n * c,
        transcendentals=n * c,
        bytes_accessed=n * c * itemsize + n * 4 + num_blocks * OUT_LANES * 4,
    )

    partials = pl.pallas_call(
        kernel,
        out_shape=jax.ShapeDtypeStruct((num_blocks, 1, OUT_LANES), jnp.float32),
        grid=(num_blocks,),
        in_specs=[
            pl.BlockSpec((tile_n, c), lambda i: (i, 0)),
            pl.BlockSpec((tile_n, 1), lambda i: (i, 0)),
        ],
        out_specs=pl.BlockSpec((1, 1, OUT_LANES), lambda i: (i, 0, 0)),
        compiler_params=pltpu.CompilerParams(
            dimension_semantics=("parallel",),
            vmem_limit_bytes=vmem_limit,
        ),
        cost_estimate=cost,
    )(output, target_2d)

    smooth = -jnp.sum(partials[:, 0, 0])   # -sum over rows of sum_c log_preds
    nll = -jnp.sum(partials[:, 0, 1])      # -sum over rows of log_preds[target]
    if reduction == 'mean':
        smooth = smooth / n
        nll = nll / n
    return smooth * (eps / c) + (1.0 - eps) * nll


def _reference(output, target, eps=0.1, reduction='mean'):
    """Pure-JAX reference of the PyTorch module for sanity checking."""
    c = output.shape[-1]
    log_preds = jax.nn.log_softmax(output.astype(jnp.float32), axis=-1)
    if reduction == 'sum':
        loss = -jnp.sum(log_preds)
        nll = -jnp.sum(jnp.take_along_axis(log_preds, target[:, None], axis=-1))
    else:
        loss = -jnp.sum(log_preds, axis=-1)
        nll = -jnp.take_along_axis(log_preds, target[:, None], axis=-1)[:, 0]
        if reduction == 'mean':
            loss = jnp.mean(loss)
            nll = jnp.mean(nll)
    return loss * eps / c + (1 - eps) * nll


if __name__ == "__main__":
    key = jax.random.PRNGKey(0)
    k1, k2, k3, k4, k5, k6 = jax.random.split(key, 6)

    # Test 1: batch=8, classes=32, reduction='mean'
    N1, C1 = 8, 32
    logits1 = jax.random.normal(k1, (N1, C1), dtype=jnp.float32)
    target1 = jax.random.randint(k2, (N1,), 0, C1, dtype=jnp.int32)
    loss1 = label_smoothing_cross_entropy(logits1, target1, eps=0.1, reduction='mean')
    loss1 = jax.block_until_ready(loss1)
    ref1 = _reference(logits1, target1, eps=0.1, reduction='mean')
    assert jnp.allclose(loss1, ref1, rtol=1e-5, atol=1e-5), (loss1, ref1)

    # Test 2: batch=13 (exercises the ragged, unpadded tail block), reduction='sum'
    N2, C2 = 13, 32
    logits2 = jax.random.normal(k3, (N2, C2), dtype=jnp.float32)
    target2 = jax.random.randint(k4, (N2,), 0, C2, dtype=jnp.int32)
    loss2 = label_smoothing_cross_entropy(logits2, target2, eps=0.1, reduction='sum')
    loss2 = jax.block_until_ready(loss2)
    ref2 = _reference(logits2, target2, eps=0.1, reduction='sum')
    assert jnp.allclose(loss2, ref2, rtol=1e-5, atol=1e-4), (loss2, ref2)

    # Test 3: batch=50, classes=48, reduction='mean' (larger scale + scaled logits)
    N3, C3 = 50, 48
    logits3 = 3.0 * jax.random.normal(k5, (N3, C3), dtype=jnp.float32)
    target3 = jax.random.randint(k6, (N3,), 0, C3, dtype=jnp.int32)
    loss3 = label_smoothing_cross_entropy(logits3, target3, eps=0.1, reduction='mean')
    loss3 = jax.block_until_ready(loss3)
    ref3 = _reference(logits3, target3, eps=0.1, reduction='mean')
    assert jnp.allclose(loss3, ref3, rtol=1e-5, atol=1e-4), (loss3, ref3)

    print("KERNEL_OK")
</pallas_src>

<mosaic_0001>
module attributes {stable_mosaic.version = 11 : i64} {
  func.func @_ls_ce_partial_kernel(%arg0: i32, %arg1: memref<8x32xf32, #tpu.memory_space<vmem>>, %arg2: memref<8x1xi32, #tpu.memory_space<vmem>>, %arg3: memref<1x1x128xf32, #tpu.memory_space<vmem>>) attributes {dimension_semantics = [#tpu.dimension_semantics<parallel>], iteration_bounds = array<i64: 1>, scalar_prefetch = 0 : i64, scratch_operands = 0 : i64, tpu.core_type = #tpu.core_type<tc>, window_params = [{transform_indices = @transform_0, window_bounds = array<i64: 8, 32>}, {transform_indices = @transform_1, window_bounds = array<i64: 8, 1>}, {transform_indices = @transform_2, window_bounds = array<i64: 1, 1, 128>}]} {
    %c0 = arith.constant 0 : index
    %c0_0 = arith.constant 0 : index
    %0 = vector.load %arg1[%c0, %c0_0] : memref<8x32xf32, #tpu.memory_space<vmem>>, vector<8x32xf32>
    %c8_i32 = arith.constant 8 : i32
    %1 = arith.muli %arg0, %c8_i32 : i32
    %2 = tpu.iota {dimensions = array<i32: 0>} : vector<8x1xi32>
    %3 = vector.broadcast %1 : i32 to vector<8x1xi32>
    %4 = arith.addi %3, %2 : vector<8x1xi32>
    %c8_i32_1 = arith.constant 8 : i32
    %5 = vector.broadcast %c8_i32_1 : i32 to vector<8x1xi32>
    %6 = arith.cmpi slt, %4, %5 : vector<8x1xi32>
    %cst = arith.constant dense<0xFF800000> : vector<8xf32>
    %7 = vector.multi_reduction <maximumf>, %0, %cst [1] : vector<8x32xf32> to vector<8xf32>
    %8 = vector.shape_cast %7 : vector<8xf32> to vector<8x1xf32>
    %9 = vector.broadcast %8 : vector<8x1xf32> to vector<8x32xf32>
    %10 = arith.subf %0, %9 : vector<8x32xf32>
    %11 = math.exp %10 : vector<8x32xf32>
    %cst_2 = arith.constant dense<0.000000e+00> : vector<8xf32>
    %12 = vector.multi_reduction <add>, %11, %cst_2 [1] : vector<8x32xf32> to vector<8xf32>
    %13 = vector.shape_cast %12 : vector<8xf32> to vector<8x1xf32>
    %14 = math.log %13 : vector<8x1xf32>
    %cst_3 = arith.constant dense<0.000000e+00> : vector<8xf32>
    %15 = vector.multi_reduction <add>, %10, %cst_3 [1] : vector<8x32xf32> to vector<8xf32>
    %16 = vector.shape_cast %15 : vector<8xf32> to vector<8x1xf32>
    %cst_4 = arith.constant 3.200000e+01 : f32
    %17 = vector.broadcast %cst_4 : f32 to vector<8x1xf32>
    %18 = arith.mulf %17, %14 : vector<8x1xf32>
    %19 = arith.subf %16, %18 : vector<8x1xf32>
    %c0_5 = arith.constant 0 : index
    %c0_6 = arith.constant 0 : index
    %20 = vector.load %arg2[%c0_5, %c0_6] : memref<8x1xi32, #tpu.memory_space<vmem>>, vector<8x1xi32>
    %21 = tpu.iota {dimensions = array<i32: 1>} : vector<1x32xi32>
    %22 = vector.broadcast %21 : vector<1x32xi32> to vector<8x32xi32>
    %23 = vector.broadcast %20 : vector<8x1xi32> to vector<8x32xi32>
    %24 = arith.cmpi eq, %22, %23 : vector<8x32xi32>
    %cst_7 = arith.constant 0.000000e+00 : f32
    %25 = vector.broadcast %cst_7 : f32 to vector<8x32xf32>
    %26 = arith.select %24, %10, %25 : vector<8x32xi1>, vector<8x32xf32>
    %cst_8 = arith.constant dense<0.000000e+00> : vector<8xf32>
    %27 = vector.multi_reduction <add>, %26, %cst_8 [1] : vector<8x32xf32> to vector<8xf32>
    %28 = vector.shape_cast %27 : vector<8xf32> to vector<8x1xf32>
    %29 = arith.subf %28, %14 : vector<8x1xf32>
    %cst_9 = arith.constant 0.000000e+00 : f32
    %30 = vector.broadcast %cst_9 : f32 to vector<8x1xf32>
    %31 = arith.select %6, %19, %30 : vector<8x1xi1>, vector<8x1xf32>
    %32 = vector.shape_cast %31 : vector<8x1xf32> to vector<1x8x1xf32>
    %cst_10 = arith.constant dense<0.000000e+00> : vector<1xf32>
    %33 = vector.multi_reduction <add>, %32, %cst_10 [1, 2] : vector<1x8x1xf32> to vector<1xf32>
    %34 = vector.shape_cast %33 : vector<1xf32> to vector<1x1x1xf32>
    %35 = vector.extract %34[0, 0, 0] : f32 from vector<1x1x1xf32>
    %cst_11 = arith.constant 0.000000e+00 : f32
    %36 = vector.broadcast %cst_11 : f32 to vector<8x1xf32>
    %37 = arith.select %6, %29, %36 : vector<8x1xi1>, vector<8x1xf32>
    %38 = vector.shape_cast %37 : vector<8x1xf32> to vector<1x8x1xf32>
    %cst_12 = arith.constant dense<0.000000e+00> : vector<1xf32>
    %39 = vector.multi_reduction <add>, %38, %cst_12 [1, 2] : vector<1x8x1xf32> to vector<1xf32>
    %40 = vector.shape_cast %39 : vector<1xf32> to vector<1x1x1xf32>
    %41 = vector.extract %40[0, 0, 0] : f32 from vector<1x1x1xf32>
    %42 = tpu.iota {dimensions = array<i32: 2>} : vector<1x1x128xi32>
    %c0_i32 = arith.constant 0 : i32
    %43 = vector.broadcast %c0_i32 : i32 to vector<1x1x128xi32>
    %44 = arith.cmpi eq, %42, %43 : vector<1x1x128xi32>
    %cst_13 = arith.constant 0.000000e+00 : f32
    %45 = vector.broadcast %35 : f32 to vector<1x1x128xf32>
    %46 = vector.broadcast %cst_13 : f32 to vector<1x1x128xf32>
    %47 = arith.select %44, %45, %46 : vector<1x1x128xi1>, vector<1x1x128xf32>
    %c1_i32 = arith.constant 1 : i32
    %48 = vector.broadcast %c1_i32 : i32 to vector<1x1x128xi32>
    %49 = arith.cmpi eq, %42, %48 : vector<1x1x128xi32>
    %cst_14 = arith.constant 0.000000e+00 : f32
    %50 = vector.broadcast %41 : f32 to vector<1x1x128xf32>
    %51 = vector.broadcast %cst_14 : f32 to vector<1x1x128xf32>
    %52 = arith.select %49, %50, %51 : vector<1x1x128xi1>, vector<1x1x128xf32>
    %53 = arith.addf %47, %52 : vector<1x1x128xf32>
    %c0_15 = arith.constant 0 : index
    %c0_16 = arith.constant 0 : index
    %c0_17 = arith.constant 0 : index
    %54 = vector.load %arg3[%c0_15, %c0_16, %c0_17] : memref<1x1x128xf32, #tpu.memory_space<vmem>>, vector<1x1x128xf32>
    tpu.vector_store %arg3[%c0_15, %c0_16, %c0_17], %53 {strides = array<i32>} : memref<1x1x128xf32, #tpu.memory_space<vmem>>, vector<1x1x128xf32>,
    return
  }
  func.func @transform_0(%arg0: i32) -> (i32, i32) {
    %c0_i32 = arith.constant 0 : i32
    %c0_i32_0 = arith.constant 0 : i32
    return %arg0, %c0_i32 : i32, i32
  }
  func.func @transform_1(%arg0: i32) -> (i32, i32) {
    %c0_i32 = arith.constant 0 : i32
    %c0_i32_0 = arith.constant 0 : i32
    return %arg0, %c0_i32 : i32, i32
  }
  func.func @transform_2(%arg0: i32) -> (i32, i32, i32) {
    %c0_i32 = arith.constant 0 : i32
    %c0_i32_0 = arith.constant 0 : i32
    %c0_i32_1 = arith.constant 0 : i32
    return %arg0, %c0_i32, %c0_i32_0 : i32, i32, i32
  }
}

</mosaic_0001>

<llo_original>
// kernel: tpu_custom_call.1
$region0: #{tpu_custom_call.1}
  #allocation0 [shape = 'u32[]', space=smem, size = 0x4, offset = 0x4, fixed_abs, tag = 'smem constant byte address 0x4 - core index']
  #allocation1 [shape = 'u32[144,128]{1,0:T(1,128)}', space=vmem, size = 0x12000, scoped, tag = 'internal scratch']
  %s0 = inlined_call_operand.vmem [shape: f32[8,32], index: 0, kind: input, shape index: {}]
  %s1 = inlined_call_operand.vmem [shape: s32[8,1], index: 1, kind: input, shape index: {}]
  %s2 = inlined_call_operand.hbm [shape: f32[1,1,128], index: 2, kind: output, shape index: {}]
  %s3 = sld [smem:[#allocation0]]
  $region18: #{tpu_custom_call.1} parent=0
    _
  %s5 = ssub.s32 1, %s3
  %s6 = scalar_select 0, %s5, %s3
  $region1: #{tpu_custom_call.1} parent=0
    #allocation2 [shape = 'u8[512]{0}', space=vmem, size = 0x400, scoped, tag = 'output window, operand 0, single buffered']
    #allocation3 [shape = 's32[1]{0}', space=sflag, size = 0x4, scoped, tag = 'scoped memory for tpu_custom_call.1']
    %7 = vsyncpa [#allocation3], 0
    // Predicated region
    $region2: #{tpu_custom_call.1} parent=1 // pred_check
      _
    $region3: #{tpu_custom_call.1} parent=1 // pred_check_branch
      %9 = sbr.rel (0) target = $region5
    $region4: #{tpu_custom_call.1} parent=1 // pred_region
      _
    $region5: #{tpu_custom_call.1} parent=1 // pred_fallthru
      _
    // Predicated region
    $region6: #{tpu_custom_call.1} parent=1 // pred_check
      _
    $region7: #{tpu_custom_call.1} parent=1 // pred_check_branch
      %11 = sbr.rel (0) target = $region9
    $region8: #{tpu_custom_call.1} parent=1 // pred_region
      _
    $region9: #{tpu_custom_call.1} parent=1 // pred_fallthru
      _
    %v12 = vld [vmem:[%s0] sm:$0xff]
    %s13 = smul.u32 0, 8
    %v14 = vlaneseq
    %v15 = vshrl.u32 %v14, 7
    %v16 = vstv %s13
    %v17 = vadd.s32 %v16, %v15
    %vm18 = vcmp.lt.s32.totalorder %v17, 8
    %vm19 = vcmask 261120
    %v20 = vsel %vm19, %v12, -inf
    %21 = vmax.xlane.f32.xlu0 %v20
    %v22 = vpop.xlane.xlu0 %21
    %v23 = vsub.f32 %v12, %v22
    %v24 = vmul.f32 %v23, 1.442695
    %v25 = vpow.pop %v24
    %v26 = vsel %vm19, %v25, 0.0
    %27 = vadd.xlane.f32.xlu0 %v26
    %v28 = vpop.xlane.xlu0 %27
    %v29 = vlog2.pop %v28
    %v30 = vmul.f32 %v29, 0.6931472
    %v31 = vsel %vm19, %v23, 0.0
    %32 = vadd.xlane.f32.xlu0 %v31
    %v33 = vpop.xlane.xlu0 %32
    %v34 = vmul.f32 %v30, 32.0
    %v35 = vsub.f32 %v33, %v34
    %v36 = vld [vmem:[%s1] sm:$0xff]
    %v37 = vlaneseq
    %v38 = vand.u32 %v37, 127
    %39 = vset.pattern.permute.xlu0 0
    %40 = vperm.xlu0 %39, %v36
    %v41 = vpop.permute.xlu0 %40
    %vm42 = vcmp.eq.s32.totalorder %v38, %v41
    %v43 = vsel %vm42, %v23, 0.0
    %v44 = vsel %vm19, %v43, 0.0
    %45 = vadd.xlane.f32.xlu0 %v44
    %v46 = vpop.xlane.xlu0 %45
    %v47 = vsub.f32 %v46, %v30
    %v48 = vsel %vm18, %v35, 0.0
    %vm49 = vcmask 7168
    %v50 = vsel %vm49, %v48, 0.0
    %51 = vadd.xlane.f32.xlu0 %v50
    %v52 = vpop.xlane.xlu0 %51
    %v53 = vrot.slane %v52, 4
    %v54 = vadd.f32 %v52, %v53
    %v55 = vrot.slane %v54, 2
    %v56 = vadd.f32 %v54, %v55
    %v57 = vrot.slane %v56, 1
    %v58 = vadd.f32 %v56, %v57
    %s59 = vtos %v58
    %v60 = vsel %vm18, %v47, 0.0
    %v61 = vsel %vm49, %v60, 0.0
    %62 = vadd.xlane.f32.xlu0 %v61
    %v63 = vpop.xlane.xlu0 %62
    %v64 = vrot.slane %v63, 4
    %v65 = vadd.f32 %v63, %v64
    %v66 = vrot.slane %v65, 2
    %v67 = vadd.f32 %v65, %v66
    %v68 = vrot.slane %v67, 1
    %v69 = vadd.f32 %v67, %v68
    %s70 = vtos %v69
    %vm71 = vcmp.eq.s32.totalorder %v38, 0
    %v72 = vstv %s59
    %v73 = vsel %vm71, %v72, 0.0
    %vm74 = vcmp.eq.s32.totalorder %v38, 1
    %v75 = vstv %s70
    %v76 = vsel %vm74, %v75, 0.0
    %v77 = vadd.f32 %v73, %v76
    %78 = vst [vmem:[#allocation2] sm:$0x1] %v77
    // Predicated region
    $region10: #{tpu_custom_call.1} parent=1 // pred_check
      _
    $region11: #{tpu_custom_call.1} parent=1 // pred_check_branch
      %80 = sbr.rel (0) target = $region13
    $region12: #{tpu_custom_call.1} parent=1 // pred_region
      %s82 = ssub.s32 16, 16
      %83 = vsyncadd [#allocation3], %s82
      %s85 = sshll.u32 [#allocation2], 4
      %s86 = int_to_ptr.vmem [resolvable:$true] %s85
      %88 = dma.vmem_to_hbm [thread:$0]  %s86, 16, %s2, [#allocation3]
    $region13: #{tpu_custom_call.1} parent=1 // pred_fallthru
      _
    // Predicated region
    $region14: #{tpu_custom_call.1} parent=1 // pred_check
      _
    $region15: #{tpu_custom_call.1} parent=1 // pred_check_branch
      %90 = sbr.rel (0) target = $region17
    $region16: #{tpu_custom_call.1} parent=1 // pred_region
      %91 = dma.done [#allocation3], 16
    $region17: #{tpu_custom_call.1} parent=1 // pred_fallthru
      _
    %92 = vsyncpa [#allocation3], 1

</llo_original>
